<compile_context>
chip_gen: v7x
topology: tpu7x:2x2x1
jax: 0.10.0
libtpu: 0.0.40
codegen_flags: <defaults>
</compile_context>

<pallas_src>
import jax
import jax.numpy as jnp
from jax.experimental import pallas as pl
from jax.experimental.pallas import tpu as pltpu


def ffn_kernel(x_ref, w1t_ref, w3t_ref, w2t_ref, o_ref, acc_ref):
    # x_ref:   (tm, d_model)
    # w1t_ref: (d_model, tn)   -- tn cols of W1^T
    # w3t_ref: (d_model, tn)   -- tn cols of W3^T
    # w2t_ref: (tn, d_model)   -- tn rows of W2^T
    # o_ref:   (tm, d_model)
    # acc_ref: (tm, d_model) f32 accumulator over the d_ffn (k) grid axis
    k = pl.program_id(1)

    @pl.when(k == 0)
    def _():
        acc_ref[...] = jnp.zeros_like(acc_ref)

    x = x_ref[...]  # native dtype; MXU accumulates in f32 via preferred_element_type

    # Canonical contractions (contract dim 1 of LHS with dim 0 of RHS): no
    # per-tile vxpose / relayout through the XLU.
    h1 = jnp.dot(x, w1t_ref[...], preferred_element_type=jnp.float32)   # (tm, tn)
    h3 = jnp.dot(x, w3t_ref[...], preferred_element_type=jnp.float32)   # (tm, tn)

    # silu(h1) * h3 in f32.  sigmoid = 1 / (1 + exp(-h1)) with the divide on the
    # EUP (approx reciprocal) so exp + recip co-issue off the VALU critical path.
    sig = pl.reciprocal(1.0 + jnp.exp(-h1), approx=True)
    g = (h1 * sig * h3).astype(w2t_ref.dtype)                            # (tm, tn)

    # acc += g @ W2^T_tile
    acc_ref[...] += jnp.dot(g, w2t_ref[...], preferred_element_type=jnp.float32)

    @pl.when(k == pl.num_programs(1) - 1)
    def _():
        o_ref[...] = acc_ref[...].astype(o_ref.dtype)


def _pick_tile(total, target, align=128):
    """Largest divisor of `total` that is <= target, preferring multiples of `align`."""
    t = min(target, total)
    if total % t == 0:
        return t
    best = None
    for cand in range(t, 0, -1):
        if total % cand == 0:
            if cand % align == 0:
                return cand
            if best is None:
                best = cand
    return best if best is not None else total


def ffn_pallas(x, w1, w2, w3, *, tm=None, tn=None):
    """x: (batch, seq, d_model); w1, w3: (d_ffn, d_model); w2: (d_model, d_ffn)
    (PyTorch nn.Linear layout, no bias).  Returns (batch, seq, d_model)."""
    b, s, d_model = x.shape
    d_ffn = w1.shape[0]
    M = b * s

    # ---- generation-specific tile targets + VMEM cap -----------------------
    kind = ""
    try:
        kind = jax.devices()[0].device_kind.lower()
    except Exception:
        pass
    is_v7 = "v7" in kind
    if is_v7:
        # 64 MiB VMEM per TC; ~310 FLOPs/byte crossover -> moderate tm, small tn.
        tm_t, tn_t, vmem_cap = 512, 256, 48 * 1024 * 1024
    elif "v6" in kind:
        # 128 MiB VMEM; ~650 FLOPs/byte crossover -> big tm to amortize weights.
        tm_t, tn_t, vmem_cap = (1024 if M >= 4096 else 512), 512, 100 * 1024 * 1024
    else:
        # v5e / unknown: ~240 FLOPs/byte crossover -> tm=256 already balanced.
        tm_t, tn_t, vmem_cap = 256, 512, 100 * 1024 * 1024

    tm = _pick_tile(M, tm_t if tm is None else tm)
    tn = _pick_tile(d_ffn, tn_t if tn is None else tn)

    # Megacore: on v7x make sure the "parallel" M axis has >= 2 grid steps so
    # both TensorCores get work.
    if is_v7 and M // tm < 2 and tm % 2 == 0 and tm >= 128:
        tm //= 2

    in_bytes = jnp.dtype(x.dtype).itemsize
    w_bytes = jnp.dtype(w1.dtype).itemsize

    def vmem_need(tm_, tn_):
        dbl = 2  # double-buffered pipeline buffers
        need = (tm_ * d_model * in_bytes * dbl          # x tile
                + tm_ * d_model * in_bytes * dbl        # out tile
                + 3 * d_model * tn_ * w_bytes * dbl     # W1^T, W3^T, W2^T tiles
                + tm_ * d_model * 4                     # f32 accumulator scratch
                + 3 * tm_ * tn_ * 4)                    # h1 / h3 / g intermediates
        return int(need * 1.25) + (4 << 20)             # compiler headroom

    # Shrink tiles if the footprint would exceed the per-generation VMEM cap
    # (halving a divisor of M / d_ffn keeps divisibility as long as it is even).
    while vmem_need(tm, tn) > vmem_cap and (tm > 128 or tn > 128):
        if tm >= tn and tm > 128 and tm % 2 == 0:
            tm //= 2
        elif tn > 128 and tn % 2 == 0:
            tn //= 2
        else:
            break

    # TODO(synk): add a padding/masking path for ragged M or odd d_ffn.
    assert M % tm == 0, f"M={M} must be divisible by tm={tm}"
    assert d_ffn % tn == 0, f"d_ffn={d_ffn} must be divisible by tn={tn}"

    vmem_limit = int(min(max(vmem_need(tm, tn), 32 << 20), vmem_cap))

    # One-time layout change outside the hot loop (store weights pre-transposed
    # in production and this goes away).
    x2d = x.reshape(M, d_model)
    w1t = w1.T   # (d_model, d_ffn)
    w3t = w3.T   # (d_model, d_ffn)
    w2t = w2.T   # (d_ffn, d_model)

    out = pl.pallas_call(
        ffn_kernel,
        out_shape=jax.ShapeDtypeStruct((M, d_model), x.dtype),
        grid_spec=pltpu.PrefetchScalarGridSpec(
            num_scalar_prefetch=0,
            grid=(M // tm, d_ffn // tn),  # reduction (d_ffn) axis last
            in_specs=[
                pl.BlockSpec((tm, d_model), lambda i, k: (i, 0)),   # x rows
                pl.BlockSpec((d_model, tn), lambda i, k: (0, k)),   # W1^T tile
                pl.BlockSpec((d_model, tn), lambda i, k: (0, k)),   # W3^T tile
                pl.BlockSpec((tn, d_model), lambda i, k: (k, 0)),   # W2^T tile
            ],
            out_specs=pl.BlockSpec((tm, d_model), lambda i, k: (i, 0)),
            scratch_shapes=[pltpu.VMEM((tm, d_model), jnp.float32)],
        ),
        compiler_params=pltpu.CompilerParams(
            dimension_semantics=("parallel", "arbitrary"),
            vmem_limit_bytes=vmem_limit,
        ),
    )(x2d, w1t, w3t, w2t)
    return out.reshape(b, s, d_model)


def ffn_ref(x, w1, w2, w3):
    h1 = jnp.einsum("bsd,fd->bsf", x, w1)
    h3 = jnp.einsum("bsd,fd->bsf", x, w3)
    g = (h1 * jax.nn.sigmoid(h1)) * h3
    return jnp.einsum("bsf,df->bsd", g, w2)


if __name__ == "__main__":
    # config: d_model=32, d_ffn_intermediate=64; x: (batch=2, seq=8, d_model)
    batch, seq, d_model, d_ffn = 2, 8, 32, 64

    key = jax.random.PRNGKey(0)
    kx, k1, k2, k3 = jax.random.split(key, 4)
    x = jax.random.normal(kx, (batch, seq, d_model), dtype=jnp.float32)
    # nn.Linear weight layout: (out_features, in_features), no bias
    w1 = jax.random.normal(k1, (d_ffn, d_model), dtype=jnp.float32) * (1.0 / d_model ** 0.5)
    w2 = jax.random.normal(k2, (d_model, d_ffn), dtype=jnp.float32) * (1.0 / d_ffn ** 0.5)
    w3 = jax.random.normal(k3, (d_ffn, d_model), dtype=jnp.float32) * (1.0 / d_model ** 0.5)

    y_ref = ffn_ref(x, w1, w2, w3)

    # f32 path (approx-reciprocal sigmoid -> slightly looser tolerance).
    y = ffn_pallas(x, w1, w2, w3)
    jax.block_until_ready(y)
    assert y.shape == (batch, seq, d_model)
    assert jnp.allclose(y, y_ref, atol=2e-2, rtol=2e-2), "f32 mismatch vs reference"

    # bf16 production-path smoke test (bf16 streams/matmuls, f32 accumulation).
    xb, w1b, w2b, w3b = (a.astype(jnp.bfloat16) for a in (x, w1, w2, w3))
    yb = ffn_pallas(xb, w1b, w2b, w3b)
    jax.block_until_ready(yb)
    assert jnp.allclose(yb.astype(jnp.float32), y_ref, atol=1e-1, rtol=1e-1), \
        "bf16 mismatch vs reference"

    print("KERNEL_OK")
</pallas_src>

<mosaic_0001>
module attributes {stable_mosaic.version = 11 : i64} {
  func.func @ffn_kernel(%arg0: i32, %arg1: i32, %arg2: memref<16x32xf32, #tpu.memory_space<vmem>>, %arg3: memref<32x64xf32, #tpu.memory_space<vmem>>, %arg4: memref<32x64xf32, #tpu.memory_space<vmem>>, %arg5: memref<64x32xf32, #tpu.memory_space<vmem>>, %arg6: memref<16x32xf32, #tpu.memory_space<vmem>>, %arg7: memref<16x32xf32, #tpu.memory_space<vmem>>) attributes {dimension_semantics = [#tpu.dimension_semantics<parallel>, #tpu.dimension_semantics<arbitrary>], iteration_bounds = array<i64: 1, 1>, scalar_prefetch = 0 : i64, scratch_operands = 1 : i64, tpu.core_type = #tpu.core_type<tc>, window_params = [{transform_indices = @transform_0, window_bounds = array<i64: 16, 32>}, {transform_indices = @transform_1, window_bounds = array<i64: 32, 64>}, {transform_indices = @transform_2, window_bounds = array<i64: 32, 64>}, {transform_indices = @transform_3, window_bounds = array<i64: 64, 32>}, {transform_indices = @transform_4, window_bounds = array<i64: 16, 32>}]} {
    %c0_i32 = arith.constant 0 : i32
    %0 = arith.cmpi eq, %arg1, %c0_i32 : i32
    %1 = arith.extui %0 : i1 to i32
    %c0_i32_0 = arith.constant 0 : i32
    %2 = arith.cmpi ne, %1, %c0_i32_0 : i32
    scf.if %2 {
      %cst_18 = arith.constant 0.000000e+00 : f32
      %24 = vector.broadcast %cst_18 : f32 to vector<16x32xf32>
      %c0_19 = arith.constant 0 : index
      %c0_20 = arith.constant 0 : index
      %25 = vector.load %arg7[%c0_19, %c0_20] : memref<16x32xf32, #tpu.memory_space<vmem>>, vector<16x32xf32>
      tpu.vector_store %arg7[%c0_19, %c0_20], %24 {strides = array<i32>} : memref<16x32xf32, #tpu.memory_space<vmem>>, vector<16x32xf32>,
    } else {
    }
    %c0 = arith.constant 0 : index
    %c0_1 = arith.constant 0 : index
    %3 = vector.load %arg2[%c0, %c0_1] : memref<16x32xf32, #tpu.memory_space<vmem>>, vector<16x32xf32>
    %c0_2 = arith.constant 0 : index
    %c0_3 = arith.constant 0 : index
    %4 = vector.load %arg3[%c0_2, %c0_3] : memref<32x64xf32, #tpu.memory_space<vmem>>, vector<32x64xf32>
    %cst = arith.constant dense<0.000000e+00> : vector<16x64xf32>
    %5 = tpu.matmul %3, %4, %cst {dimension_numbers = #tpu.dot_dimension_numbers<[1], [0], [0], [1], [0, 0, 1, 1], [], []>} : vector<16x32xf32>, vector<32x64xf32>, vector<16x64xf32> -> vector<16x64xf32>
    %c0_4 = arith.constant 0 : index
    %c0_5 = arith.constant 0 : index
    %6 = vector.load %arg4[%c0_4, %c0_5] : memref<32x64xf32, #tpu.memory_space<vmem>>, vector<32x64xf32>
    %cst_6 = arith.constant dense<0.000000e+00> : vector<16x64xf32>
    %7 = tpu.matmul %3, %6, %cst_6 {dimension_numbers = #tpu.dot_dimension_numbers<[1], [0], [0], [1], [0, 0, 1, 1], [], []>} : vector<16x32xf32>, vector<32x64xf32>, vector<16x64xf32> -> vector<16x64xf32>
    %cst_7 = arith.constant 0.000000e+00 : f32
    %8 = vector.broadcast %cst_7 : f32 to vector<16x64xf32>
    %9 = arith.subf %8, %5 : vector<16x64xf32>
    %10 = math.exp %9 : vector<16x64xf32>
    %cst_8 = arith.constant 1.000000e+00 : f32
    %11 = vector.broadcast %cst_8 : f32 to vector<16x64xf32>
    %12 = arith.addf %11, %10 : vector<16x64xf32>
    %13 = tpu.reciprocal %12 {approx = true} : vector<16x64xf32> -> vector<16x64xf32>
    %14 = arith.mulf %5, %13 : vector<16x64xf32>
    %15 = arith.mulf %14, %7 : vector<16x64xf32>
    %c0_9 = arith.constant 0 : index
    %c0_10 = arith.constant 0 : index
    %16 = vector.load %arg7[%c0_9, %c0_10] : memref<16x32xf32, #tpu.memory_space<vmem>>, vector<16x32xf32>
    %c0_11 = arith.constant 0 : index
    %c0_12 = arith.constant 0 : index
    %17 = vector.load %arg5[%c0_11, %c0_12] : memref<64x32xf32, #tpu.memory_space<vmem>>, vector<64x32xf32>
    %cst_13 = arith.constant dense<0.000000e+00> : vector<16x32xf32>
    %18 = tpu.matmul %15, %17, %cst_13 {dimension_numbers = #tpu.dot_dimension_numbers<[1], [0], [0], [1], [0, 0, 1, 1], [], []>} : vector<16x64xf32>, vector<64x32xf32>, vector<16x32xf32> -> vector<16x32xf32>
    %19 = arith.addf %16, %18 : vector<16x32xf32>
    %c0_14 = arith.constant 0 : index
    %c0_15 = arith.constant 0 : index
    %20 = vector.load %arg7[%c0_14, %c0_15] : memref<16x32xf32, #tpu.memory_space<vmem>>, vector<16x32xf32>
    tpu.vector_store %arg7[%c0_14, %c0_15], %19 {strides = array<i32>} : memref<16x32xf32, #tpu.memory_space<vmem>>, vector<16x32xf32>,
    %c0_i32_16 = arith.constant 0 : i32
    %21 = arith.cmpi eq, %arg1, %c0_i32_16 : i32
    %22 = arith.extui %21 : i1 to i32
    %c0_i32_17 = arith.constant 0 : i32
    %23 = arith.cmpi ne, %22, %c0_i32_17 : i32
    scf.if %23 {
      %c0_18 = arith.constant 0 : index
      %c0_19 = arith.constant 0 : index
      %24 = vector.load %arg7[%c0_18, %c0_19] : memref<16x32xf32, #tpu.memory_space<vmem>>, vector<16x32xf32>
      %c0_20 = arith.constant 0 : index
      %c0_21 = arith.constant 0 : index
      %25 = vector.load %arg6[%c0_20, %c0_21] : memref<16x32xf32, #tpu.memory_space<vmem>>, vector<16x32xf32>
      tpu.vector_store %arg6[%c0_20, %c0_21], %24 {strides = array<i32>} : memref<16x32xf32, #tpu.memory_space<vmem>>, vector<16x32xf32>,
    } else {
    }
    return
  }
  func.func @transform_0(%arg0: i32, %arg1: i32) -> (i32, i32) {
    %c0_i32 = arith.constant 0 : i32
    %c0_i32_0 = arith.constant 0 : i32
    return %arg0, %c0_i32 : i32, i32
  }
  func.func @transform_1(%arg0: i32, %arg1: i32) -> (i32, i32) {
    %c0_i32 = arith.constant 0 : i32
    %c0_i32_0 = arith.constant 0 : i32
    return %c0_i32, %arg1 : i32, i32
  }
  func.func @transform_2(%arg0: i32, %arg1: i32) -> (i32, i32) {
    %c0_i32 = arith.constant 0 : i32
    %c0_i32_0 = arith.constant 0 : i32
    return %c0_i32, %arg1 : i32, i32
  }
  func.func @transform_3(%arg0: i32, %arg1: i32) -> (i32, i32) {
    %c0_i32 = arith.constant 0 : i32
    %c0_i32_0 = arith.constant 0 : i32
    return %arg1, %c0_i32 : i32, i32
  }
  func.func @transform_4(%arg0: i32, %arg1: i32) -> (i32, i32) {
    %c0_i32 = arith.constant 0 : i32
    %c0_i32_0 = arith.constant 0 : i32
    return %arg0, %c0_i32 : i32, i32
  }
}

</mosaic_0001>

<llo_original>
// kernel: tpu_custom_call.1
$region0: #{tpu_custom_call.1}
  #allocation0 [shape = 'u32[]', space=smem, size = 0x4, offset = 0x4, fixed_abs, tag = 'smem constant byte address 0x4 - core index']
  #allocation1 [shape = 'u32[144,128]{1,0:T(1,128)}', space=vmem, size = 0x12000, scoped, tag = 'internal scratch']
  #allocation2 [shape = 'f32[16,32]{1,0:T(8,128)}', space=vmem, size = 0x2000, scoped, tag = 'scratch operand']
  %s0 = inlined_call_operand.vmem [shape: f32[16,32], index: 0, kind: input, shape index: {}]
  %s1 = inlined_call_operand.vmem [shape: f32[32,64], index: 1, kind: input, shape index: {}]
  %s2 = inlined_call_operand.vmem [shape: f32[32,64], index: 2, kind: input, shape index: {}]
  %s3 = inlined_call_operand.vmem [shape: f32[64,32], index: 3, kind: input, shape index: {}]
  %s4 = inlined_call_operand.hbm [shape: f32[16,32], index: 4, kind: output, shape index: {}]
  %s5 = sld [smem:[#allocation0]]
  $region34: #{tpu_custom_call.1} parent=0
    _
  %s7 = ssub.s32 1, %s5
  %s8 = scalar_select 0, %s7, %s5
  $region1: #{tpu_custom_call.1} parent=0
    #allocation3 [shape = 'u8[8192]{0}', space=vmem, size = 0x2000, scoped, tag = 'output window, operand 0, single buffered']
    #allocation4 [shape = 's32[1]{0}', space=sflag, size = 0x4, scoped, tag = 'scoped memory for tpu_custom_call.1']
    %9 = vsyncpa [#allocation4], 0
    // Predicated region
    $region2: #{tpu_custom_call.1} parent=1 // pred_check
      _
    $region3: #{tpu_custom_call.1} parent=1 // pred_check_branch
      %11 = sbr.rel (0) target = $region5
    $region4: #{tpu_custom_call.1} parent=1 // pred_region
      _
    $region5: #{tpu_custom_call.1} parent=1 // pred_fallthru
      _
    // Predicated region
    $region6: #{tpu_custom_call.1} parent=1 // pred_check
      _
    $region7: #{tpu_custom_call.1} parent=1 // pred_check_branch
      %13 = sbr.rel (0) target = $region9
    $region8: #{tpu_custom_call.1} parent=1 // pred_region
      _
    $region9: #{tpu_custom_call.1} parent=1 // pred_fallthru
      _
    // Predicated region
    $region10: #{tpu_custom_call.1} parent=1 // pred_check
      _
    $region11: #{tpu_custom_call.1} parent=1 // pred_check_branch
      %15 = sbr.rel (0) target = $region13
    $region12: #{tpu_custom_call.1} parent=1 // pred_region
      _
    $region13: #{tpu_custom_call.1} parent=1 // pred_fallthru
      _
    // Predicated region
    $region14: #{tpu_custom_call.1} parent=1 // pred_check
      _
    $region15: #{tpu_custom_call.1} parent=1 // pred_check_branch
      %17 = sbr.rel (0) target = $region17
    $region16: #{tpu_custom_call.1} parent=1 // pred_region
      _
    $region17: #{tpu_custom_call.1} parent=1 // pred_fallthru
      _
    %p18 = scmp.eq.s32.totalorder 0, 0
    // Predicated region
    $region18: #{tpu_custom_call.1} parent=1 // pred_check
      %p19 = pneg %p18
    $region19: #{tpu_custom_call.1} parent=1 // pred_check_branch
      %21 = sbr.rel (%p19) target = $region21
    $region20: #{tpu_custom_call.1} parent=1 // pred_region
      %vm22 = vcmask 261120
      %23 = vst.msk [vmem:[#allocation2] sm:$0xff] %vm22, 0.0
      %24 = vst.msk [vmem:[#allocation2 + $0x8] sm:$0xff] %vm22, 0.0
    $region21: #{tpu_custom_call.1} parent=1 // pred_fallthru
      _
    %v25 = vld [vmem:[%s0] sm:$0xff]
    %v26 = vld [vmem:[%s0 + $0x8] sm:$0xff]
    %v27 = vld [vmem:[%s1] sm:$0xff]
    %v28 = vld [vmem:[%s1 + $0x8] sm:$0xff]
    %v29 = vld [vmem:[%s1 + $0x10] sm:$0xff]
    %v30 = vld [vmem:[%s1 + $0x18] sm:$0xff]
    %vm31 = vcmask 261120
    %v33 = vsel %vm31, %v25, 0
    %v36 = vsel %vm31, %v26, 0
    %38 = vmatprep.subr.mxu0 0.0
    %39 = vmatpush1.msra.mxu0 %v27
    %40 = vmatprep.subr.mxu0 0.0
    %41 = vmatpush1.msra.mxu0 %v28
    %42 = vmatprep.subr.mxu0 0.0
    %43 = vmatpush1.msra.mxu0 %v29
    %44 = vmatprep.subr.mxu0 0.0
    %45 = vmatpush1.msra.mxu0 %v30
    %46 = vmatprep.subr.mxu0 0.0
    %47 = vmatpush1.msra.mxu0 0.0
    %48 = vmatprep.subr.mxu0 0.0
    %49 = vmatpush1.msra.mxu0 0.0
    %50 = vmatprep.subr.mxu0 0.0
    %51 = vmatpush1.msra.mxu0 0.0
    %52 = vmatprep.subr.mxu0 0.0
    %53 = vmatpush1.msra.mxu0 0.0
    %54 = vmatprep.subr.mxu0 0.0
    %55 = vmatpush1.msra.mxu0 0.0
    %56 = vmatprep.subr.mxu0 0.0
    %57 = vmatpush1.msra.mxu0 0.0
    %58 = vmatprep.subr.mxu0 0.0
    %59 = vmatpush1.msra.mxu0 0.0
    %60 = vmatprep.subr.mxu0 0.0
    %61 = vmatpush1.msra.mxu0 0.0
    %62 = vmatprep.subr.mxu0 0.0
    %63 = vmatpush1.msra.mxu0 0.0
    %64 = vmatprep.subr.mxu0 0.0
    %65 = vmatpush1.msra.mxu0 0.0
    %66 = vmatprep.subr.mxu0 0.0
    %67 = vmatpush1.msra.mxu0 0.0
    %68 = vmatprep.subr.mxu0 0.0
    %69 = vmatpush1.msra.mxu0 0.0
    %70 = vmatprep.subr.mxu0 0.0
    %71 = vmatpush1.msra.mxu0 0.0
    %72 = vmatprep.subr.mxu0 0.0
    %73 = vmatpush1.msra.mxu0 0.0
    %74 = vmatprep.subr.mxu0 0.0
    %75 = vmatpush1.msra.mxu0 0.0
    %76 = vmatprep.subr.mxu0 0.0
    %77 = vmatpush1.msra.mxu0 0.0
    %78 = vmatprep.subr.mxu0 0.0
    %79 = vmatpush1.msra.mxu0 0.0
    %80 = vmatprep.subr.mxu0 0.0
    %81 = vmatpush1.msra.mxu0 0.0
    %82 = vmatprep.subr.mxu0 0.0
    %83 = vmatpush1.msra.mxu0 0.0
    %84 = vmatprep.subr.mxu0 0.0
    %85 = vmatpush1.msra.mxu0 0.0
    %86 = vmatprep.subr.mxu0 0.0
    %87 = vmatpush1.msra.mxu0 0.0
    %88 = vmatprep.subr.mxu0 0.0
    %89 = vmatpush1.msra.mxu0 0.0
    %90 = vmatprep.subr.mxu0 0.0
    %91 = vmatpush1.msra.mxu0 0.0
    %92 = vmatprep.subr.mxu0 0.0
    %93 = vmatpush1.msra.mxu0 0.0
    %94 = vmatprep.subr.mxu0 0.0
    %95 = vmatpush1.msra.mxu0 0.0
    %96 = vmatprep.subr.mxu0 0.0
    %97 = vmatpush1.msra.mxu0 0.0
    %98 = vmatprep.subr.mxu0 0.0
    %99 = vmatpush1.msra.mxu0 0.0
    %100 = vmatprep.subr.mxu0 0.0
    %101 = vmatpush1.msra.mxu0 0.0
    %102 = vmatprep.mubr.f32.mxu0 0.0
    %103 = vmatmul.mubr.f32.gmra.mrb[0].mxu0 %v33
    %v104 = vpop.f32.mrb[0].mxu0
    %v105 = vadd.f32 0.0, %v104
    %v106 = vpop.f32.mrb[0].mxu0
    %107 = vmatprep.mubr.f32.mxu0 0.0
    %108 = vmatmul.mubr.f32.gmra.mrb[0].mxu0 %v36
    %v109 = vpop.f32.mrb[0].mxu0
    %v110 = vadd.f32 0.0, %v109
    %v111 = vpop.f32.mrb[0].mxu0
    %112 = vdwg.mxu0
    %v113 = vld [vmem:[%s2] sm:$0xff]
    %v114 = vld [vmem:[%s2 + $0x8] sm:$0xff]
    %v115 = vld [vmem:[%s2 + $0x10] sm:$0xff]
    %v116 = vld [vmem:[%s2 + $0x18] sm:$0xff]
    %117 = vmatprep.subr.mxu0 0.0
    %118 = vmatpush1.msra.mxu0 %v113
    %119 = vmatprep.subr.mxu0 0.0
    %120 = vmatpush1.msra.mxu0 %v114
    %121 = vmatprep.subr.mxu0 0.0
    %122 = vmatpush1.msra.mxu0 %v115
    %123 = vmatprep.subr.mxu0 0.0
    %124 = vmatpush1.msra.mxu0 %v116
    %125 = vmatprep.subr.mxu0 0.0
    %126 = vmatpush1.msra.mxu0 0.0
    %127 = vmatprep.subr.mxu0 0.0
    %128 = vmatpush1.msra.mxu0 0.0
    %129 = vmatprep.subr.mxu0 0.0
    %130 = vmatpush1.msra.mxu0 0.0
    %131 = vmatprep.subr.mxu0 0.0
    %132 = vmatpush1.msra.mxu0 0.0
    %133 = vmatprep.subr.mxu0 0.0
    %134 = vmatpush1.msra.mxu0 0.0
    %135 = vmatprep.subr.mxu0 0.0
    %136 = vmatpush1.msra.mxu0 0.0
    %137 = vmatprep.subr.mxu0 0.0
    %138 = vmatpush1.msra.mxu0 0.0
    %139 = vmatprep.subr.mxu0 0.0
    %140 = vmatpush1.msra.mxu0 0.0
    %141 = vmatprep.subr.mxu0 0.0
    %142 = vmatpush1.msra.mxu0 0.0
    %143 = vmatprep.subr.mxu0 0.0
    %144 = vmatpush1.msra.mxu0 0.0
    %145 = vmatprep.subr.mxu0 0.0
    %146 = vmatpush1.msra.mxu0 0.0
    %147 = vmatprep.subr.mxu0 0.0
    %148 = vmatpush1.msra.mxu0 0.0
    %149 = vmatprep.subr.mxu0 0.0
    %150 = vmatpush1.msra.mxu0 0.0
    %151 = vmatprep.subr.mxu0 0.0
    %152 = vmatpush1.msra.mxu0 0.0
    %153 = vmatprep.subr.mxu0 0.0
    %154 = vmatpush1.msra.mxu0 0.0
    %155 = vmatprep.subr.mxu0 0.0
    %156 = vmatpush1.msra.mxu0 0.0
    %157 = vmatprep.subr.mxu0 0.0
    %158 = vmatpush1.msra.mxu0 0.0
    %159 = vmatprep.subr.mxu0 0.0
    %160 = vmatpush1.msra.mxu0 0.0
    %161 = vmatprep.subr.mxu0 0.0
    %162 = vmatpush1.msra.mxu0 0.0
    %163 = vmatprep.subr.mxu0 0.0
    %164 = vmatpush1.msra.mxu0 0.0
    %165 = vmatprep.subr.mxu0 0.0
    %166 = vmatpush1.msra.mxu0 0.0
    %167 = vmatprep.subr.mxu0 0.0
    %168 = vmatpush1.msra.mxu0 0.0
    %169 = vmatprep.subr.mxu0 0.0
    %170 = vmatpush1.msra.mxu0 0.0
    %171 = vmatprep.subr.mxu0 0.0
    %172 = vmatpush1.msra.mxu0 0.0
    %173 = vmatprep.subr.mxu0 0.0
    %174 = vmatpush1.msra.mxu0 0.0
    %175 = vmatprep.subr.mxu0 0.0
    %176 = vmatpush1.msra.mxu0 0.0
    %177 = vmatprep.subr.mxu0 0.0
    %178 = vmatpush1.msra.mxu0 0.0
    %179 = vmatprep.subr.mxu0 0.0
    %180 = vmatpush1.msra.mxu0 0.0
    %181 = vmatprep.mubr.f32.mxu0 0.0
    %182 = vmatmul.mubr.f32.gmra.mrb[0].mxu0 %v33
    %v183 = vpop.f32.mrb[0].mxu0
    %v184 = vadd.f32 0.0, %v183
    %v185 = vpop.f32.mrb[0].mxu0
    %186 = vmatprep.mubr.f32.mxu0 0.0
    %187 = vmatmul.mubr.f32.gmra.mrb[0].mxu0 %v36
    %v188 = vpop.f32.mrb[0].mxu0
    %v189 = vadd.f32 0.0, %v188
    %v190 = vpop.f32.mrb[0].mxu0
    %191 = vdwg.mxu0
    %v192 = vsub.f32 0.0, %v105
    %v193 = vsub.f32 0.0, %v110
    %v194 = vmul.f32 %v192, 1.442695
    %v195 = vpow.pop %v194
    %v196 = vmul.f32 %v193, 1.442695
    %v197 = vpow.pop %v196
    %v198 = vadd.f32 %v195, 1.0
    %v199 = vadd.f32 %v197, 1.0
    %v200 = vrcp.pop %v198
    %v201 = vrcp.pop %v199
    %v202 = vmul.f32 %v105, %v200
    %v203 = vmul.f32 %v110, %v201
    %v204 = vmul.f32 %v202, %v184
    %v205 = vmul.f32 %v203, %v189
    %v206 = vld [vmem:[#allocation2] sm:$0xff]
    %v207 = vld [vmem:[#allocation2 + $0x8] sm:$0xff]
    %v208 = vld [vmem:[%s3] sm:$0xff]
    %v209 = vld [vmem:[%s3 + $0x8] sm:$0xff]
    %v210 = vld [vmem:[%s3 + $0x10] sm:$0xff]
    %v211 = vld [vmem:[%s3 + $0x18] sm:$0xff]
    %v212 = vld [vmem:[%s3 + $0x20] sm:$0xff]
    %v213 = vld [vmem:[%s3 + $0x28] sm:$0xff]
    %v214 = vld [vmem:[%s3 + $0x30] sm:$0xff]
    %v215 = vld [vmem:[%s3 + $0x38] sm:$0xff]
    %vm216 = vcmask 523264
    %v218 = vsel %vm216, %v204, 0
    %v221 = vsel %vm216, %v205, 0
    %223 = vmatprep.subr.mxu0 0.0
    %224 = vmatpush1.msra.mxu0 %v208
    %225 = vmatprep.subr.mxu0 0.0
    %226 = vmatpush1.msra.mxu0 %v209
    %227 = vmatprep.subr.mxu0 0.0
    %228 = vmatpush1.msra.mxu0 %v210
    %229 = vmatprep.subr.mxu0 0.0
    %230 = vmatpush1.msra.mxu0 %v211
    %231 = vmatprep.subr.mxu0 0.0
    %232 = vmatpush1.msra.mxu0 %v212
    %233 = vmatprep.subr.mxu0 0.0
    %234 = vmatpush1.msra.mxu0 %v213
    %235 = vmatprep.subr.mxu0 0.0
    %236 = vmatpush1.msra.mxu0 %v214
    %237 = vmatprep.subr.mxu0 0.0
    %238 = vmatpush1.msra.mxu0 %v215
    %239 = vmatprep.subr.mxu0 0.0
    %240 = vmatpush1.msra.mxu0 0.0
    %241 = vmatprep.subr.mxu0 0.0
    %242 = vmatpush1.msra.mxu0 0.0
    %243 = vmatprep.subr.mxu0 0.0
    %244 = vmatpush1.msra.mxu0 0.0
    %245 = vmatprep.subr.mxu0 0.0
    %246 = vmatpush1.msra.mxu0 0.0
    %247 = vmatprep.subr.mxu0 0.0
    %248 = vmatpush1.msra.mxu0 0.0
    %249 = vmatprep.subr.mxu0 0.0
    %250 = vmatpush1.msra.mxu0 0.0
    %251 = vmatprep.subr.mxu0 0.0
    %252 = vmatpush1.msra.mxu0 0.0
    %253 = vmatprep.subr.mxu0 0.0
    %254 = vmatpush1.msra.mxu0 0.0
    %255 = vmatprep.subr.mxu0 0.0
    %256 = vmatpush1.msra.mxu0 0.0
    %257 = vmatprep.subr.mxu0 0.0
    %258 = vmatpush1.msra.mxu0 0.0
    %259 = vmatprep.subr.mxu0 0.0
    %260 = vmatpush1.msra.mxu0 0.0
    %261 = vmatprep.subr.mxu0 0.0
    %262 = vmatpush1.msra.mxu0 0.0
    %263 = vmatprep.subr.mxu0 0.0
    %264 = vmatpush1.msra.mxu0 0.0
    %265 = vmatprep.subr.mxu0 0.0
    %266 = vmatpush1.msra.mxu0 0.0
    %267 = vmatprep.subr.mxu0 0.0
    %268 = vmatpush1.msra.mxu0 0.0
    %269 = vmatprep.subr.mxu0 0.0
    %270 = vmatpush1.msra.mxu0 0.0
    %271 = vmatprep.subr.mxu0 0.0
    %272 = vmatpush1.msra.mxu0 0.0
    %273 = vmatprep.subr.mxu0 0.0
    %274 = vmatpush1.msra.mxu0 0.0
    %275 = vmatprep.subr.mxu0 0.0
    %276 = vmatpush1.msra.mxu0 0.0
    %277 = vmatprep.subr.mxu0 0.0
    %278 = vmatpush1.msra.mxu0 0.0
    %279 = vmatprep.subr.mxu0 0.0
    %280 = vmatpush1.msra.mxu0 0.0
    %281 = vmatprep.subr.mxu0 0.0
    %282 = vmatpush1.msra.mxu0 0.0
    %283 = vmatprep.subr.mxu0 0.0
    %284 = vmatpush1.msra.mxu0 0.0
    %285 = vmatprep.subr.mxu0 0.0
    %286 = vmatpush1.msra.mxu0 0.0
    %287 = vmatprep.mubr.f32.mxu0 0.0
    %288 = vmatmul.mubr.f32.gmra.mrb[0].mxu0 %v218
    %v289 = vpop.f32.mrb[0].mxu0
    %v290 = vadd.f32 0.0, %v289
    %v291 = vpop.f32.mrb[0].mxu0
    %292 = vmatprep.mubr.f32.mxu0 0.0
    %293 = vmatmul.mubr.f32.gmra.mrb[0].mxu0 %v221
    %v294 = vpop.f32.mrb[0].mxu0
    %v295 = vadd.f32 0.0, %v294
    %v296 = vpop.f32.mrb[0].mxu0
    %297 = vdwg.mxu0
    %v298 = vadd.f32 %v206, %v290
    %v299 = vadd.f32 %v207, %v295
    %300 = vst.msk [vmem:[#allocation2] sm:$0xff] %vm31, %v298
    %301 = vst.msk [vmem:[#allocation2 + $0x8] sm:$0xff] %vm31, %v299
    // Predicated region
    $region22: #{tpu_custom_call.1} parent=1 // pred_check
      %p302 = pneg %p18
    $region23: #{tpu_custom_call.1} parent=1 // pred_check_branch
      %304 = sbr.rel (%p302) target = $region25
    $region24: #{tpu_custom_call.1} parent=1 // pred_region
      %v305 = vld [vmem:[#allocation2] sm:$0xff]
      %v306 = vld [vmem:[#allocation2 + $0x8] sm:$0xff]
      %307 = vst.msk [vmem:[#allocation3] sm:$0xff] %vm31, %v305
      %308 = vst.msk [vmem:[#allocation3 + $0x8] sm:$0xff] %vm31, %v306
    $region25: #{tpu_custom_call.1} parent=1 // pred_fallthru
      _
    // Predicated region
    $region26: #{tpu_custom_call.1} parent=1 // pred_check
      _
    $region27: #{tpu_custom_call.1} parent=1 // pred_check_branch
      %310 = sbr.rel (0) target = $region29
    $region28: #{tpu_custom_call.1} parent=1 // pred_region
      %s312 = ssub.s32 256, 256
      %313 = vsyncadd [#allocation4], %s312
      %s314 = sshll.u32 [#allocation3], 4
      %s315 = int_to_ptr.vmem [resolvable:$true] %s314
      %320 = dma.vmem_to_hbm [thread:$0]  %s315, 256, %s4, [#allocation4], 128, 128, 8
    $region29: #{tpu_custom_call.1} parent=1 // pred_fallthru
      _
    // Predicated region
    $region30: #{tpu_custom_call.1} parent=1 // pred_check
      _
    $region31: #{tpu_custom_call.1} parent=1 // pred_check_branch
      %322 = sbr.rel (0) target = $region33
    $region32: #{tpu_custom_call.1} parent=1 // pred_region
      %323 = dma.done [#allocation4], 256
    $region33: #{tpu_custom_call.1} parent=1 // pred_fallthru
      _
    %324 = vsyncpa [#allocation4], 1

</llo_original>
